<compile_context>
chip_gen: v6e
topology: v6e:2x2x1
jax: 0.10.0
libtpu: 0.0.40
codegen_flags: <defaults>
</compile_context>

<pallas_src>
import functools

import jax
import jax.numpy as jnp
from jax.experimental import pallas as pl
from jax.experimental.pallas import tpu as pltpu


def _round_up(x, m):
    return ((x + m - 1) // m) * m


def _vmem_capacity_bytes():
    """Per-core VMEM capacity (trace-time query); conservative v7x default on failure."""
    try:
        return int(pltpu.get_tpu_info().vmem_capacity_bytes)
    except Exception:
        return 64 * 1024 * 1024


def _hyperconv_kernel(xa_ref, xb_ref, w_ref, b_ref, o_ref, xcol_ref, *, K, CI, Wp):
    # xa_ref:   (CI, TF)        main TH-row tile, spatial (rows * Wp) flattened on lanes
    # xb_ref:   (CI, HB*Wp)     halo: the next HB padded rows of the same image
    # w_ref:    (CO, K*K*CI)    hyper-generated weights, tap-major / channel-minor
    # b_ref:    (CO, 1)
    # o_ref:    (CO, TF)        lane-dense output slab (cropped to (HO, WO) in the wrapper)
    # xcol_ref: (K*K*CI, TF)    VMEM scratch holding the im2col stack
    TF = o_ref.shape[1]

    # In-VMEM "im2col": one lane-shifted view per conv tap, written straight into scratch.
    # Each tap is assembled from the main tile and the halo tile (all slice bounds static).
    for kh in range(K):
        for kw in range(K):
            t = kh * K + kw
            off = kh * Wp + kw
            r0 = t * CI
            xcol_ref[r0:r0 + CI, 0:TF - off] = xa_ref[:, off:TF]
            if off:
                xcol_ref[r0:r0 + CI, TF - off:TF] = xb_ref[:, 0:off]

    # Single fused MXU contraction over K*K*CI, f32 accumulation, lane-dense result,
    # one bulk store (no per-row masked stores).
    acc = jnp.dot(w_ref[...], xcol_ref[...], preferred_element_type=jnp.float32)
    o_ref[...] = (acc + b_ref[...]).astype(o_ref.dtype)


def _hyper_conv2d_pallas(x_nchw, weight_oihw, bias, ksize, padding):
    """stride=1, dilation=1, groups=1, zero-padded conv2d (NCHW / OIHW) via Pallas."""
    N, CI, H, W = x_nchw.shape
    CO = weight_oihw.shape[0]
    K = ksize
    HB = 8                                   # halo rows streamed per tile

    Hp_t = H + 2 * padding                   # true (conv) padded extents
    Wp_t = W + 2 * padding
    HO = Hp_t - K + 1
    WO = Wp_t - K + 1
    assert HO > 0 and WO > 0, "output would be empty"

    # Column padding: lane-align the flattened row stride.  Wide images round up to 128 so
    # the kh*Wp tap offsets are lane-tile aligned; small images keep 16 so the zero pad
    # does not blow up HBM bytes (TH % 8 == 0 keeps TH*Wp % 128 == 0 either way).
    Wp = _round_up(Wp_t, 128) if Wp_t >= 100 else _round_up(Wp_t, 16)
    # All K*K taps must fit inside the main tile + HB-row halo.
    assert (K - 1) * Wp + (K - 1) <= HB * Wp, "ksize too large for the row-halo scheme"

    KKC = K * K * CI
    itemsize = x_nchw.dtype.itemsize

    # ---- tile-height heuristic (per-generation VMEM budgets) ---------------------------
    vmem_cap = _vmem_capacity_bytes()
    # v5e/v6e (128 MiB physical): large tiles amortize per-step overhead + halo re-reads.
    # v7x (64 MiB physical): keep the per-tile working set around ~12 MiB.
    budget = (28 << 20) if vmem_cap >= (96 << 20) else (12 << 20)
    # Per output row: double-buffered xa + out blocks, xcol scratch, f32 acc.
    per_row = itemsize * Wp * (2 * CI + 2 * CO + KKC) + 4 * Wp * CO
    # Fixed: double-buffered halo / weight / bias blocks.
    fixed = itemsize * (2 * CI * HB * Wp + 2 * CO * KKC) + 4 * 2 * 8 * 128
    th_budget = max(HB, ((budget - fixed) // per_row // HB) * HB)
    th_rows = max(HB, _round_up(HO, HB))     # no point exceeding the output rows
    # Keep >= 4 grid programs when possible so both v7x TensorCores (megacore) get work.
    want_tiles = -(-4 // N)
    th_parallel = max(HB, ((HO // want_tiles) // HB) * HB)
    TH = int(min(th_budget, th_rows, th_parallel))
    assert TH % HB == 0                      # halo index_map invariant
    R = -(-HO // TH)                         # number of row tiles (last one is cropped)
    Hpad = R * TH + HB                       # padded rows: halo block always in range
    TF = TH * Wp

    working_set = fixed + per_row * TH
    vmem_limit = int(min(max(working_set * 14 // 10 + (4 << 20), 32 << 20),
                         vmem_cap * 5 // 8))

    # One HBM prep pass: zero-pad rows (conv padding + halo slack) and columns (conv
    # padding + lane alignment).  Channels are NOT padded (true CI streamed).
    xp = jnp.pad(x_nchw, ((0, 0), (0, 0),
                          (padding, Hpad - H - padding),
                          (padding, Wp - W - padding)))
    xf = xp.reshape(N, CI, Hpad * Wp)

    # Hyper-generated weights -> (CO, K*K*CI), tap-major / channel-minor (matches xcol).
    w2 = jnp.transpose(weight_oihw, (0, 2, 3, 1)).reshape(CO, KKC).astype(x_nchw.dtype)
    b2 = bias.reshape(CO, 1).astype(jnp.float32)
    # TODO(synk): cast xf/w2 to bfloat16 on v6e/v7x (f32 accumulator stays) to halve HBM
    # traffic; requires relaxing the 1e-4 self-check to ~1e-2.

    kernel = functools.partial(_hyperconv_kernel, K=K, CI=CI, Wp=Wp)

    out_flat = pl.pallas_call(
        kernel,
        out_shape=jax.ShapeDtypeStruct((N, CO, R * TF), x_nchw.dtype),
        grid=(N, R),
        in_specs=[
            # main TH-row tile (flattened spatial, true CI on the sublane axis)
            pl.BlockSpec((None, CI, TF), lambda n, r: (n, 0, r)),
            # HB-row halo block of the same array (block index in units of HB rows)
            pl.BlockSpec((None, CI, HB * Wp),
                         lambda n, r: (n, 0, (r + 1) * (TH // HB))),
            # weights and bias: resident, fetched once (constant index map)
            pl.BlockSpec((CO, KKC), lambda n, r: (0, 0)),
            pl.BlockSpec((CO, 1), lambda n, r: (0, 0)),
        ],
        # lane-dense flat output: one bulk (CO, TH*Wp) store per tile
        out_specs=pl.BlockSpec((None, CO, TF), lambda n, r: (n, 0, r)),
        scratch_shapes=[pltpu.VMEM((KKC, TF), x_nchw.dtype)],
        compiler_params=pltpu.CompilerParams(
            dimension_semantics=("parallel", "parallel"),
            vmem_limit_bytes=vmem_limit,
        ),
    )(xf, xf, w2, b2)

    # Crop the lane/row padding back to the true conv output (NCHW).
    return out_flat.reshape(N, CO, R * TH, Wp)[:, :, :HO, :WO]


class HyperConv2d:
    """JAX/Pallas port of nonrigid_nerf HyperConv2d (forward only)."""

    def __init__(self, dim_in, dim_out, ksize=3, stride=1, padding=0, dilation=1,
                 groups=1, bias=True, transpose=False, *, key):
        assert dim_in % groups == 0 and dim_out % groups == 0, \
            "dim_in and dim_out must both be divisible by groups."
        # TODO(synk): only the default conv path (stride=1, dilation=1, groups=1,
        # transpose=False) is implemented as a Pallas kernel.
        assert stride == 1 and dilation == 1 and groups == 1 and not transpose
        self.dim_in, self.dim_out, self.ksize = dim_in, dim_out, ksize
        self.stride, self.padding = stride, padding
        self.dilation, self.groups = dilation, groups
        self.bias, self.transpose = bias, transpose

        self.params_dim = dim_in * dim_out * ksize * ksize // groups
        if bias:
            self.params_dim += dim_out
        # _hypernet = nn.Linear(1, params_dim) after weights_init:
        #   nn.init.constant_(weight, 0) ; nn.init.normal_(bias, 0, 0.01)
        self.hyper_w = jnp.zeros((self.params_dim, 1), jnp.float32)
        self.hyper_b = 0.01 * jax.random.normal(key, (self.params_dim,), dtype=jnp.float32)

    def hyper_params(self, t):
        # nn.Linear: out = t @ W^T + b, with t viewed as (1, 1)
        return (jnp.reshape(t, (1, 1)).astype(jnp.float32) @ self.hyper_w.T
                + self.hyper_b[None, :]).reshape(-1)

    def __call__(self, t, x):
        params = self.hyper_params(t)
        weight_size = self.dim_in * self.dim_out * self.ksize * self.ksize // self.groups
        weight = params[:weight_size].reshape(
            self.dim_out, self.dim_in // self.groups, self.ksize, self.ksize)   # OIHW
        if self.bias:
            # Faithful to the original PyTorch code: bias reuses the FIRST dim_out entries
            # of params (overlapping the weight values); it is NOT params[weight_size:].
            bias = params[:self.dim_out]
        else:
            bias = jnp.zeros((self.dim_out,), params.dtype)
        return _hyper_conv2d_pallas(x, weight, bias, self.ksize, self.padding)


if __name__ == "__main__":
    key = jax.random.PRNGKey(0)
    k_hyper, k_x, k_t, k_x2 = jax.random.split(key, 4)

    dim_in, dim_out, ksize = 4, 8, 3
    N, H, W = 2, 16, 16

    # --- case 1: padding=0, HO % TH != 0 (HO=14, TH=8) ---------------------------------
    module = HyperConv2d(dim_in, dim_out, ksize=ksize, padding=0, bias=True, key=k_hyper)
    x = jax.random.normal(k_x, (N, dim_in, H, W), dtype=jnp.float32)   # NCHW, like PyTorch
    t = jax.random.uniform(k_t, (), dtype=jnp.float32)

    out = jax.block_until_ready(module(t, x))
    assert out.shape == (N, dim_out, H - ksize + 1, W - ksize + 1)

    params = module.hyper_params(t)
    w_ref = params[:dim_in * dim_out * ksize * ksize].reshape(dim_out, dim_in, ksize, ksize)
    b_ref = params[:dim_out]
    ref = jax.lax.conv_general_dilated(
        x, w_ref, window_strides=(1, 1), padding=((0, 0), (0, 0)),
        dimension_numbers=('NCHW', 'OIHW', 'NCHW')) + b_ref[None, :, None, None]
    assert jnp.allclose(out, ref, atol=1e-4, rtol=1e-4), \
        f"max abs err {jnp.max(jnp.abs(out - ref))}"

    # --- case 2: padding=1, odd spatial extent, N=1 -------------------------------------
    module2 = HyperConv2d(dim_in, dim_out, ksize=ksize, padding=1, bias=True, key=k_hyper)
    x2 = jax.random.normal(k_x2, (1, dim_in, 13, 13), dtype=jnp.float32)
    out2 = jax.block_until_ready(module2(t, x2))
    params2 = module2.hyper_params(t)
    w2r = params2[:dim_in * dim_out * ksize * ksize].reshape(dim_out, dim_in, ksize, ksize)
    b2r = params2[:dim_out]
    ref2 = jax.lax.conv_general_dilated(
        x2, w2r, window_strides=(1, 1), padding=((1, 1), (1, 1)),
        dimension_numbers=('NCHW', 'OIHW', 'NCHW')) + b2r[None, :, None, None]
    assert out2.shape == ref2.shape
    assert jnp.allclose(out2, ref2, atol=1e-4, rtol=1e-4), \
        f"max abs err {jnp.max(jnp.abs(out2 - ref2))}"

    print("KERNEL_OK")
</pallas_src>

<mosaic_0001>
module attributes {stable_mosaic.version = 11 : i64} {
  func.func @_hyperconv_kernel(%arg0: i32, %arg1: i32, %arg2: memref<1x4x128xf32, #tpu.memory_space<vmem>>, %arg3: memref<1x4x128xf32, #tpu.memory_space<vmem>>, %arg4: memref<8x36xf32, #tpu.memory_space<vmem>>, %arg5: memref<8x1xf32, #tpu.memory_space<vmem>>, %arg6: memref<1x8x128xf32, #tpu.memory_space<vmem>>, %arg7: memref<36x128xf32, #tpu.memory_space<vmem>>) attributes {dimension_semantics = [#tpu.dimension_semantics<parallel>, #tpu.dimension_semantics<parallel>], iteration_bounds = array<i64: 2, 2>, scalar_prefetch = 0 : i64, scratch_operands = 1 : i64, tpu.core_type = #tpu.core_type<tc>, window_params = [{transform_indices = @transform_0, window_bounds = array<i64: 1, 4, 128>}, {transform_indices = @transform_1, window_bounds = array<i64: 1, 4, 128>}, {pipeline_mode = #tpu.pipeline_mode<synchronous>, transform_indices = @transform_2, window_bounds = array<i64: 8, 36>}, {pipeline_mode = #tpu.pipeline_mode<synchronous>, transform_indices = @transform_3, window_bounds = array<i64: 8, 1>}, {transform_indices = @transform_4, window_bounds = array<i64: 1, 8, 128>}]} {
    %c0 = arith.constant 0 : index
    %c0_0 = arith.constant 0 : index
    %c0_1 = arith.constant 0 : index
    %0 = vector.load %arg2[%c0, %c0_0, %c0_1] : memref<1x4x128xf32, #tpu.memory_space<vmem>>, vector<1x4x128xf32>
    %1 = vector.shape_cast %0 : vector<1x4x128xf32> to vector<4x128xf32>
    %c0_2 = arith.constant 0 : index
    %c0_3 = arith.constant 0 : index
    %2 = vector.load %arg7[%c0_2, %c0_3] : memref<36x128xf32, #tpu.memory_space<vmem>>, vector<4x128xf32>
    tpu.vector_store %arg7[%c0_2, %c0_3], %1 {strides = array<i32>} : memref<36x128xf32, #tpu.memory_space<vmem>>, vector<4x128xf32>,
    %c0_4 = arith.constant 0 : index
    %c0_5 = arith.constant 0 : index
    %c1 = arith.constant 1 : index
    %3 = vector.load %arg2[%c0_4, %c0_5, %c1] : memref<1x4x128xf32, #tpu.memory_space<vmem>>, vector<1x4x127xf32>
    %4 = vector.shape_cast %3 : vector<1x4x127xf32> to vector<4x127xf32>
    %c4 = arith.constant 4 : index
    %c0_6 = arith.constant 0 : index
    %5 = vector.load %arg7[%c4, %c0_6] : memref<36x128xf32, #tpu.memory_space<vmem>>, vector<4x127xf32>
    tpu.vector_store %arg7[%c4, %c0_6], %4 {strides = array<i32>} : memref<36x128xf32, #tpu.memory_space<vmem>>, vector<4x127xf32>,
    %c0_7 = arith.constant 0 : index
    %c0_8 = arith.constant 0 : index
    %c0_9 = arith.constant 0 : index
    %6 = vector.load %arg3[%c0_7, %c0_8, %c0_9] : memref<1x4x128xf32, #tpu.memory_space<vmem>>, vector<1x4x1xf32>
    %7 = vector.shape_cast %6 : vector<1x4x1xf32> to vector<4x1xf32>
    %c4_10 = arith.constant 4 : index
    %c127 = arith.constant 127 : index
    %8 = vector.load %arg7[%c4_10, %c127] : memref<36x128xf32, #tpu.memory_space<vmem>>, vector<4x1xf32>
    tpu.vector_store %arg7[%c4_10, %c127], %7 {strides = array<i32>} : memref<36x128xf32, #tpu.memory_space<vmem>>, vector<4x1xf32>,
    %c0_11 = arith.constant 0 : index
    %c0_12 = arith.constant 0 : index
    %c2 = arith.constant 2 : index
    %9 = vector.load %arg2[%c0_11, %c0_12, %c2] : memref<1x4x128xf32, #tpu.memory_space<vmem>>, vector<1x4x126xf32>
    %10 = vector.shape_cast %9 : vector<1x4x126xf32> to vector<4x126xf32>
    %c8 = arith.constant 8 : index
    %c0_13 = arith.constant 0 : index
    %11 = vector.load %arg7[%c8, %c0_13] : memref<36x128xf32, #tpu.memory_space<vmem>>, vector<4x126xf32>
    tpu.vector_store %arg7[%c8, %c0_13], %10 {strides = array<i32>} : memref<36x128xf32, #tpu.memory_space<vmem>>, vector<4x126xf32>,
    %c0_14 = arith.constant 0 : index
    %c0_15 = arith.constant 0 : index
    %c0_16 = arith.constant 0 : index
    %12 = vector.load %arg3[%c0_14, %c0_15, %c0_16] : memref<1x4x128xf32, #tpu.memory_space<vmem>>, vector<1x4x2xf32>
    %13 = vector.shape_cast %12 : vector<1x4x2xf32> to vector<4x2xf32>
    %c8_17 = arith.constant 8 : index
    %c126 = arith.constant 126 : index
    %14 = vector.load %arg7[%c8_17, %c126] : memref<36x128xf32, #tpu.memory_space<vmem>>, vector<4x2xf32>
    tpu.vector_store %arg7[%c8_17, %c126], %13 {strides = array<i32>} : memref<36x128xf32, #tpu.memory_space<vmem>>, vector<4x2xf32>,
    %c0_18 = arith.constant 0 : index
    %c0_19 = arith.constant 0 : index
    %c16 = arith.constant 16 : index
    %15 = vector.load %arg2[%c0_18, %c0_19, %c16] : memref<1x4x128xf32, #tpu.memory_space<vmem>>, vector<1x4x112xf32>
    %16 = vector.shape_cast %15 : vector<1x4x112xf32> to vector<4x112xf32>
    %c12 = arith.constant 12 : index
    %c0_20 = arith.constant 0 : index
    %17 = vector.load %arg7[%c12, %c0_20] : memref<36x128xf32, #tpu.memory_space<vmem>>, vector<4x112xf32>
    tpu.vector_store %arg7[%c12, %c0_20], %16 {strides = array<i32>} : memref<36x128xf32, #tpu.memory_space<vmem>>, vector<4x112xf32>,
    %c0_21 = arith.constant 0 : index
    %c0_22 = arith.constant 0 : index
    %c0_23 = arith.constant 0 : index
    %18 = vector.load %arg3[%c0_21, %c0_22, %c0_23] : memref<1x4x128xf32, #tpu.memory_space<vmem>>, vector<1x4x16xf32>
    %19 = vector.shape_cast %18 : vector<1x4x16xf32> to vector<4x16xf32>
    %c12_24 = arith.constant 12 : index
    %c112 = arith.constant 112 : index
    %20 = vector.load %arg7[%c12_24, %c112] : memref<36x128xf32, #tpu.memory_space<vmem>>, vector<4x16xf32>
    tpu.vector_store %arg7[%c12_24, %c112], %19 {strides = array<i32>} : memref<36x128xf32, #tpu.memory_space<vmem>>, vector<4x16xf32>,
    %c0_25 = arith.constant 0 : index
    %c0_26 = arith.constant 0 : index
    %c17 = arith.constant 17 : index
    %21 = vector.load %arg2[%c0_25, %c0_26, %c17] : memref<1x4x128xf32, #tpu.memory_space<vmem>>, vector<1x4x111xf32>
    %22 = vector.shape_cast %21 : vector<1x4x111xf32> to vector<4x111xf32>
    %c16_27 = arith.constant 16 : index
    %c0_28 = arith.constant 0 : index
    %23 = vector.load %arg7[%c16_27, %c0_28] : memref<36x128xf32, #tpu.memory_space<vmem>>, vector<4x111xf32>
    tpu.vector_store %arg7[%c16_27, %c0_28], %22 {strides = array<i32>} : memref<36x128xf32, #tpu.memory_space<vmem>>, vector<4x111xf32>,
    %c0_29 = arith.constant 0 : index
    %c0_30 = arith.constant 0 : index
    %c0_31 = arith.constant 0 : index
    %24 = vector.load %arg3[%c0_29, %c0_30, %c0_31] : memref<1x4x128xf32, #tpu.memory_space<vmem>>, vector<1x4x17xf32>
    %25 = vector.shape_cast %24 : vector<1x4x17xf32> to vector<4x17xf32>
    %c16_32 = arith.constant 16 : index
    %c111 = arith.constant 111 : index
    %26 = vector.load %arg7[%c16_32, %c111] : memref<36x128xf32, #tpu.memory_space<vmem>>, vector<4x17xf32>
    tpu.vector_store %arg7[%c16_32, %c111], %25 {strides = array<i32>} : memref<36x128xf32, #tpu.memory_space<vmem>>, vector<4x17xf32>,
    %c0_33 = arith.constant 0 : index
    %c0_34 = arith.constant 0 : index
    %c18 = arith.constant 18 : index
    %27 = vector.load %arg2[%c0_33, %c0_34, %c18] : memref<1x4x128xf32, #tpu.memory_space<vmem>>, vector<1x4x110xf32>
    %28 = vector.shape_cast %27 : vector<1x4x110xf32> to vector<4x110xf32>
    %c20 = arith.constant 20 : index
    %c0_35 = arith.constant 0 : index
    %29 = vector.load %arg7[%c20, %c0_35] : memref<36x128xf32, #tpu.memory_space<vmem>>, vector<4x110xf32>
    tpu.vector_store %arg7[%c20, %c0_35], %28 {strides = array<i32>} : memref<36x128xf32, #tpu.memory_space<vmem>>, vector<4x110xf32>,
    %c0_36 = arith.constant 0 : index
    %c0_37 = arith.constant 0 : index
    %c0_38 = arith.constant 0 : index
    %30 = vector.load %arg3[%c0_36, %c0_37, %c0_38] : memref<1x4x128xf32, #tpu.memory_space<vmem>>, vector<1x4x18xf32>
    %31 = vector.shape_cast %30 : vector<1x4x18xf32> to vector<4x18xf32>
    %c20_39 = arith.constant 20 : index
    %c110 = arith.constant 110 : index
    %32 = vector.load %arg7[%c20_39, %c110] : memref<36x128xf32, #tpu.memory_space<vmem>>, vector<4x18xf32>
    tpu.vector_store %arg7[%c20_39, %c110], %31 {strides = array<i32>} : memref<36x128xf32, #tpu.memory_space<vmem>>, vector<4x18xf32>,
    %c0_40 = arith.constant 0 : index
    %c0_41 = arith.constant 0 : index
    %c32 = arith.constant 32 : index
    %33 = vector.load %arg2[%c0_40, %c0_41, %c32] : memref<1x4x128xf32, #tpu.memory_space<vmem>>, vector<1x4x96xf32>
    %34 = vector.shape_cast %33 : vector<1x4x96xf32> to vector<4x96xf32>
    %c24 = arith.constant 24 : index
    %c0_42 = arith.constant 0 : index
    %35 = vector.load %arg7[%c24, %c0_42] : memref<36x128xf32, #tpu.memory_space<vmem>>, vector<4x96xf32>
    tpu.vector_store %arg7[%c24, %c0_42], %34 {strides = array<i32>} : memref<36x128xf32, #tpu.memory_space<vmem>>, vector<4x96xf32>,
    %c0_43 = arith.constant 0 : index
    %c0_44 = arith.constant 0 : index
    %c0_45 = arith.constant 0 : index
    %36 = vector.load %arg3[%c0_43, %c0_44, %c0_45] : memref<1x4x128xf32, #tpu.memory_space<vmem>>, vector<1x4x32xf32>
    %37 = vector.shape_cast %36 : vector<1x4x32xf32> to vector<4x32xf32>
    %c24_46 = arith.constant 24 : index
    %c96 = arith.constant 96 : index
    %38 = vector.load %arg7[%c24_46, %c96] : memref<36x128xf32, #tpu.memory_space<vmem>>, vector<4x32xf32>
    tpu.vector_store %arg7[%c24_46, %c96], %37 {strides = array<i32>} : memref<36x128xf32, #tpu.memory_space<vmem>>, vector<4x32xf32>,
    %c0_47 = arith.constant 0 : index
    %c0_48 = arith.constant 0 : index
    %c33 = arith.constant 33 : index
    %39 = vector.load %arg2[%c0_47, %c0_48, %c33] : memref<1x4x128xf32, #tpu.memory_space<vmem>>, vector<1x4x95xf32>
    %40 = vector.shape_cast %39 : vector<1x4x95xf32> to vector<4x95xf32>
    %c28 = arith.constant 28 : index
    %c0_49 = arith.constant 0 : index
    %41 = vector.load %arg7[%c28, %c0_49] : memref<36x128xf32, #tpu.memory_space<vmem>>, vector<4x95xf32>
    tpu.vector_store %arg7[%c28, %c0_49], %40 {strides = array<i32>} : memref<36x128xf32, #tpu.memory_space<vmem>>, vector<4x95xf32>,
    %c0_50 = arith.constant 0 : index
    %c0_51 = arith.constant 0 : index
    %c0_52 = arith.constant 0 : index
    %42 = vector.load %arg3[%c0_50, %c0_51, %c0_52] : memref<1x4x128xf32, #tpu.memory_space<vmem>>, vector<1x4x33xf32>
    %43 = vector.shape_cast %42 : vector<1x4x33xf32> to vector<4x33xf32>
    %c28_53 = arith.constant 28 : index
    %c95 = arith.constant 95 : index
    %44 = vector.load %arg7[%c28_53, %c95] : memref<36x128xf32, #tpu.memory_space<vmem>>, vector<4x33xf32>
    tpu.vector_store %arg7[%c28_53, %c95], %43 {strides = array<i32>} : memref<36x128xf32, #tpu.memory_space<vmem>>, vector<4x33xf32>,
    %c0_54 = arith.constant 0 : index
    %c0_55 = arith.constant 0 : index
    %c34 = arith.constant 34 : index
    %45 = vector.load %arg2[%c0_54, %c0_55, %c34] : memref<1x4x128xf32, #tpu.memory_space<vmem>>, vector<1x4x94xf32>
    %46 = vector.shape_cast %45 : vector<1x4x94xf32> to vector<4x94xf32>
    %c32_56 = arith.constant 32 : index
    %c0_57 = arith.constant 0 : index
    %47 = vector.load %arg7[%c32_56, %c0_57] : memref<36x128xf32, #tpu.memory_space<vmem>>, vector<4x94xf32>
    tpu.vector_store %arg7[%c32_56, %c0_57], %46 {strides = array<i32>} : memref<36x128xf32, #tpu.memory_space<vmem>>, vector<4x94xf32>,
    %c0_58 = arith.constant 0 : index
    %c0_59 = arith.constant 0 : index
    %c0_60 = arith.constant 0 : index
    %48 = vector.load %arg3[%c0_58, %c0_59, %c0_60] : memref<1x4x128xf32, #tpu.memory_space<vmem>>, vector<1x4x34xf32>
    %49 = vector.shape_cast %48 : vector<1x4x34xf32> to vector<4x34xf32>
    %c32_61 = arith.constant 32 : index
    %c94 = arith.constant 94 : index
    %50 = vector.load %arg7[%c32_61, %c94] : memref<36x128xf32, #tpu.memory_space<vmem>>, vector<4x34xf32>
    tpu.vector_store %arg7[%c32_61, %c94], %49 {strides = array<i32>} : memref<36x128xf32, #tpu.memory_space<vmem>>, vector<4x34xf32>,
    %c0_62 = arith.constant 0 : index
    %c0_63 = arith.constant 0 : index
    %51 = vector.load %arg4[%c0_62, %c0_63] : memref<8x36xf32, #tpu.memory_space<vmem>>, vector<8x36xf32>
    %c0_64 = arith.constant 0 : index
    %c0_65 = arith.constant 0 : index
    %52 = vector.load %arg7[%c0_64, %c0_65] : memref<36x128xf32, #tpu.memory_space<vmem>>, vector<36x128xf32>
    %cst = arith.constant dense<0.000000e+00> : vector<8x128xf32>
    %53 = tpu.matmul %51, %52, %cst {dimension_numbers = #tpu.dot_dimension_numbers<[1], [0], [0], [1], [0, 0, 1, 1], [], []>} : vector<8x36xf32>, vector<36x128xf32>, vector<8x128xf32> -> vector<8x128xf32>
    %c0_66 = arith.constant 0 : index
    %c0_67 = arith.constant 0 : index
    %54 = vector.load %arg5[%c0_66, %c0_67] : memref<8x1xf32, #tpu.memory_space<vmem>>, vector<8x1xf32>
    %55 = vector.broadcast %54 : vector<8x1xf32> to vector<8x128xf32>
    %56 = arith.addf %53, %55 : vector<8x128xf32>
    %c0_68 = arith.constant 0 : index
    %c0_69 = arith.constant 0 : index
    %c0_70 = arith.constant 0 : index
    %57 = vector.load %arg6[%c0_68, %c0_69, %c0_70] : memref<1x8x128xf32, #tpu.memory_space<vmem>>, vector<1x8x128xf32>
    %58 = vector.shape_cast %57 : vector<1x8x128xf32> to vector<8x128xf32>
    %59 = vector.shape_cast %56 : vector<8x128xf32> to vector<1x8x128xf32>
    tpu.vector_store %arg6[%c0_68, %c0_69, %c0_70], %59 {strides = array<i32>} : memref<1x8x128xf32, #tpu.memory_space<vmem>>, vector<1x8x128xf32>,
    return
  }
  func.func @transform_0(%arg0: i32, %arg1: i32) -> (i32, i32, i32) {
    %c0_i32 = arith.constant 0 : i32
    %c0_i32_0 = arith.constant 0 : i32
    return %arg0, %c0_i32, %arg1 : i32, i32, i32
  }
  func.func @transform_1(%arg0: i32, %arg1: i32) -> (i32, i32, i32) {
    %c1_i32 = arith.constant 1 : i32
    %0 = arith.addi %arg1, %c1_i32 : i32
    %c1_i32_0 = arith.constant 1 : i32
    %1 = arith.muli %0, %c1_i32_0 : i32
    %c0_i32 = arith.constant 0 : i32
    %c0_i32_1 = arith.constant 0 : i32
    return %arg0, %c0_i32, %1 : i32, i32, i32
  }
  func.func @transform_2(%arg0: i32, %arg1: i32) -> (i32, i32) {
    %c0_i32 = arith.constant 0 : i32
    %c0_i32_0 = arith.constant 0 : i32
    %c0_i32_1 = arith.constant 0 : i32
    return %c0_i32, %c0_i32_0 : i32, i32
  }
  func.func @transform_3(%arg0: i32, %arg1: i32) -> (i32, i32) {
    %c0_i32 = arith.constant 0 : i32
    %c0_i32_0 = arith.constant 0 : i32
    %c0_i32_1 = arith.constant 0 : i32
    return %c0_i32, %c0_i32_0 : i32, i32
  }
  func.func @transform_4(%arg0: i32, %arg1: i32) -> (i32, i32, i32) {
    %c0_i32 = arith.constant 0 : i32
    %c0_i32_0 = arith.constant 0 : i32
    return %arg0, %c0_i32, %arg1 : i32, i32, i32
  }
}

</mosaic_0001>

<llo_original>
// kernel: tpu_custom_call.1
$region0: #{tpu_custom_call.1}
  #allocation0 [shape = 'u32[]', space=smem, size = 0x4, offset = 0x4, fixed_abs, tag = 'smem constant byte address 0x4 - core index']
  #allocation1 [shape = 'u32[144,128]{1,0:T(1,128)}', space=vmem, size = 0x12000, scoped, tag = 'internal scratch']
  #allocation2 [shape = 'f32[36,128]{1,0:T(8,128)}', space=vmem, size = 0x5000, scoped, tag = 'scratch operand']
  %s0 = inlined_call_operand.hbm [shape: f32[2,4,384], index: 0, kind: input, shape index: {}]
  %s1 = inlined_call_operand.hbm [shape: f32[2,4,384], index: 1, kind: input, shape index: {}]
  %s2 = inlined_call_operand.vmem [shape: f32[8,36], index: 2, kind: input, shape index: {}]
  %s3 = inlined_call_operand.vmem [shape: f32[8,1], index: 3, kind: input, shape index: {}]
  %s4 = inlined_call_operand.hbm [shape: f32[2,8,256], index: 4, kind: output, shape index: {}]
  %s5 = sld [smem:[#allocation0]]
  $region57: #{tpu_custom_call.1} parent=0
    _
  %s7 = ssub.s32 1, %s5
  %s8 = scalar_select 0, %s7, %s5
  $region1: #{tpu_custom_call.1} parent=0
    #allocation3 [shape = 'u8[4096]{0}', space=vmem, size = 0x1000, scoped, tag = 'input window, operand 0']
    #allocation4 [shape = 's32[2]{0}', space=sflag, size = 0x8, scoped, tag = 'scoped memory for tpu_custom_call.1']
    #allocation5 [shape = 's32[2]{0}', space=sflag, size = 0x8, scoped, tag = 'scoped memory for tpu_custom_call.1']
    #allocation6 [shape = 'u8[4096]{0}', space=vmem, size = 0x1000, scoped, tag = 'input window, operand 1']
    #allocation7 [shape = 's32[2]{0}', space=sflag, size = 0x8, scoped, tag = 'scoped memory for tpu_custom_call.1']
    #allocation8 [shape = 'u8[8192]{0}', space=vmem, size = 0x2000, scoped, tag = 'output window, operand 0']
    %9 = vsyncpa [#allocation4], 0
    %s10 = scalar_lea.sflag [#allocation4], 1
    %11 = vsyncpa %s10, 0
    %12 = vsyncpa [#allocation7], 0
    %s13 = scalar_lea.sflag [#allocation7], 1
    %14 = vsyncpa %s13, 0
    %15 = vsyncpa [#allocation5], 0
    %s16 = scalar_lea.sflag [#allocation5], 1
    %17 = vsyncpa %s16, 0
    loop: start=0, step=1, limit=6
    $region2: #{tpu_custom_call.1} parent=1 // loop_pre_header
      _
    $region3: #{tpu_custom_call.1} parent=1 // loop_header
      %s19 = sphi 0, %s23
      %p20 = scmp.ge.s32.totalorder %s19, 6
      %s26 = sphi 0, %s38
      %s27 = sphi 0, %s34
      %s28 = sphi 0, %s26
      %s29 = sphi 0, %s27
      %s30 = sphi 0, %s28
      %s31 = sphi 0, %s29
      %s43 = sphi 0, %s45
      %s46 = sphi 0, %s43
      %s47 = sphi 0, %s46
      %s63 = sphi 0, %s47
      %s73 = sphi 0, %s75
      %s76 = sphi 0, %s73
      %s77 = sphi 0, %s76
      %s93 = sphi 0, %s77
      %s97 = sphi 0, %s97
      %s99 = sphi 0, %s97
      %s100 = sphi 0, %s99
      %s114 = sphi 0, %s100
      %s118 = sphi 0, %s118
      %s120 = sphi 0, %s118
      %s121 = sphi 0, %s120
      %s135 = sphi 0, %s121
      %s143 = sphi 0, %s145
      %s146 = sphi 0, %s143
      %s147 = sphi 0, %s146
      %s163 = sphi 0, %s147
    $region4: #{tpu_custom_call.1} parent=1 // loop_header_branch
      %22 = sbr.rel (%p20) target = $region8
    $region5: #{tpu_custom_call.1} parent=1 // loop_body
      %s24 = ssub.s32 %s19, 1
      %s25 = ssub.s32 %s19, 2
      %s32 = sadd.s32 1, %s27
      %p33 = scmp.ge.s32.totalorder %s32, 2
      %s34 = scalar_select %p33, 0, %s32
      %s35 = sadd.s32 1, %s26
      %s36 = scalar_select %p33, %s35, %s26
      %p37 = scmp.ge.s32.totalorder %s36, 2
      %s38 = scalar_select %p37, 0, %s36
      %s39 = ssub.s32 %s26, %s38
      %s40 = ssub.s32 %s27, %s34
      %s41 = sor.u32 %s39, %s40
      %p42 = scmp.eq.s32.totalorder %s41, 0
      %s44 = sadd.s32 %s43, 1
      %s45 = scalar_select %p42, %s43, %s44
      %p48 = pneg %p42
      %p49 = scmp.eq.s32.totalorder %s19, 3
      %p50 = por %p48, %p49
      %p51 = scmp.ne.s32.totalorder %s43, %s46
      %p52 = scmp.eq.s32.totalorder %s19, 0
      %p53 = por %p51, %p52
      %p54 = scmp.ne.s32.totalorder %s43, %s46
      %p55 = scmp.eq.s32.totalorder %s24, 3
      %p56 = por %p54, %p55
      %p57 = scmp.ne.s32.totalorder %s46, %s47
      %p58 = scmp.eq.s32.totalorder %s24, 0
      %p59 = por %p57, %p58
      %p60 = scmp.ne.s32.totalorder %s46, %s47
      %p61 = scmp.eq.s32.totalorder %s25, 3
      %p62 = por %p60, %p61
      %p64 = scmp.ne.s32.totalorder %s47, %s63
      %p65 = scmp.eq.s32.totalorder %s25, 0
      %p66 = por %p64, %p65
      %s67 = sadd.s32 %s27, 1
      %s68 = sadd.s32 %s34, 1
      %s69 = ssub.s32 %s26, %s38
      %s70 = ssub.s32 %s67, %s68
      %s71 = sor.u32 %s69, %s70
      %p72 = scmp.eq.s32.totalorder %s71, 0
      %s74 = sadd.s32 %s73, 1
      %s75 = scalar_select %p72, %s73, %s74
      %p78 = pneg %p72
      %p79 = scmp.eq.s32.totalorder %s19, 3
      %p80 = por %p78, %p79
      %p81 = scmp.ne.s32.totalorder %s73, %s76
      %p82 = scmp.eq.s32.totalorder %s19, 0
      %p83 = por %p81, %p82
      %p84 = scmp.ne.s32.totalorder %s73, %s76
      %p85 = scmp.eq.s32.totalorder %s24, 3
      %p86 = por %p84, %p85
      %p87 = scmp.ne.s32.totalorder %s76, %s77
      %p88 = scmp.eq.s32.totalorder %s24, 0
      %p89 = por %p87, %p88
      %p90 = scmp.ne.s32.totalorder %s76, %s77
      %p91 = scmp.eq.s32.totalorder %s25, 3
      %p92 = por %p90, %p91
      %p94 = scmp.ne.s32.totalorder %s77, %s93
      %p95 = scmp.eq.s32.totalorder %s25, 0
      %p96 = por %p94, %p95
      %s98 = sadd.s32 %s97, 1
      %p101 = scmp.eq.s32.totalorder %s19, 3
      %p102 = scmp.ne.s32.totalorder %s97, %s99
      %p103 = scmp.eq.s32.totalorder %s19, 0
      %p104 = por %p102, %p103
      %p105 = scmp.ne.s32.totalorder %s97, %s99
      %p106 = scmp.eq.s32.totalorder %s24, 3
      %p107 = por %p105, %p106
      %p108 = scmp.ne.s32.totalorder %s99, %s100
      %p109 = scmp.eq.s32.totalorder %s24, 0
      %p110 = por %p108, %p109
      %p111 = scmp.ne.s32.totalorder %s99, %s100
      %p112 = scmp.eq.s32.totalorder %s25, 3
      %p113 = por %p111, %p112
      %p115 = scmp.ne.s32.totalorder %s100, %s114
      %p116 = scmp.eq.s32.totalorder %s25, 0
      %p117 = por %p115, %p116
      %s119 = sadd.s32 %s118, 1
      %p122 = scmp.eq.s32.totalorder %s19, 3
      %p123 = scmp.ne.s32.totalorder %s118, %s120
      %p124 = scmp.eq.s32.totalorder %s19, 0
      %p125 = por %p123, %p124
      %p126 = scmp.ne.s32.totalorder %s118, %s120
      %p127 = scmp.eq.s32.totalorder %s24, 3
      %p128 = por %p126, %p127
      %p129 = scmp.ne.s32.totalorder %s120, %s121
      %p130 = scmp.eq.s32.totalorder %s24, 0
      %p131 = por %p129, %p130
      %p132 = scmp.ne.s32.totalorder %s120, %s121
      %p133 = scmp.eq.s32.totalorder %s25, 3
      %p134 = por %p132, %p133
      %p136 = scmp.ne.s32.totalorder %s121, %s135
      %p137 = scmp.eq.s32.totalorder %s25, 0
      %p138 = por %p136, %p137
      %s139 = ssub.s32 %s26, %s38
      %s140 = ssub.s32 %s27, %s34
      %s141 = sor.u32 %s139, %s140
      %p142 = scmp.eq.s32.totalorder %s141, 0
      %s144 = sadd.s32 %s143, 1
      %s145 = scalar_select %p142, %s143, %s144
      %p148 = pneg %p142
      %p149 = scmp.eq.s32.totalorder %s19, 3
      %p150 = por %p148, %p149
      %p151 = scmp.ne.s32.totalorder %s143, %s146
      %p152 = scmp.eq.s32.totalorder %s19, 0
      %p153 = por %p151, %p152
      %p154 = scmp.ne.s32.totalorder %s143, %s146
      %p155 = scmp.eq.s32.totalorder %s24, 3
      %p156 = por %p154, %p155
      %p157 = scmp.ne.s32.totalorder %s146, %s147
      %p158 = scmp.eq.s32.totalorder %s24, 0
      %p159 = por %p157, %p158
      %p160 = scmp.ne.s32.totalorder %s146, %s147
      %p161 = scmp.eq.s32.totalorder %s25, 3
      %p162 = por %p160, %p161
      %p164 = scmp.ne.s32.totalorder %s147, %s163
      %p165 = scmp.eq.s32.totalorder %s25, 0
      %p166 = por %p164, %p165
      %p167 = scmp.le.s32.totalorder 1, %s19
      %p168 = scmp.lt.s32.totalorder %s19, 5
      %p169 = pnand %p167, %p168
      %p170 = pneg %p169
      // Predicated region
      $region9: #{tpu_custom_call.1} parent=5 // pred_check
        _
      $region10: #{tpu_custom_call.1} parent=5 // pred_check_branch
        %172 = sbr.rel (%p169) target = $region12
      $region11: #{tpu_custom_call.1} parent=5 // pred_region
        %s173 = ssub.s32 %s19, 1
        // Predicated region
        $region13: #{tpu_custom_call.1} parent=11 // pred_check
          %p174 = pneg %p110
        $region14: #{tpu_custom_call.1} parent=11 // pred_check_branch
          %176 = sbr.rel (%p174) target = $region16
        $region15: #{tpu_custom_call.1} parent=11 // pred_region
          _
        $region16: #{tpu_custom_call.1} parent=11 // pred_fallthru
          _
        // Predicated region
        $region17: #{tpu_custom_call.1} parent=11 // pred_check
          %p177 = pneg %p131
        $region18: #{tpu_custom_call.1} parent=11 // pred_check_branch
          %179 = sbr.rel (%p177) target = $region20
        $region19: #{tpu_custom_call.1} parent=11 // pred_region
          _
        $region20: #{tpu_custom_call.1} parent=11 // pred_fallthru
          _
      $region12: #{tpu_custom_call.1} parent=5 // pred_fallthru
        _
      %p180 = scmp.lt.s32.totalorder %s19, 4
      // Predicated region
      $region21: #{tpu_custom_call.1} parent=5 // pred_check
        %p181 = pneg %p180
      $region22: #{tpu_custom_call.1} parent=5 // pred_check_branch
        %183 = sbr.rel (%p181) target = $region24
      $region23: #{tpu_custom_call.1} parent=5 // pred_region
        // Predicated region
        $region25: #{tpu_custom_call.1} parent=23 // pred_check
          %p184 = pneg %p53
        $region26: #{tpu_custom_call.1} parent=23 // pred_check_branch
          %186 = sbr.rel (%p184) target = $region28
        $region27: #{tpu_custom_call.1} parent=23 // pred_region
          %s187 = sand.u32 %s43, 1
          %s188 = scalar_lea.sflag [#allocation4], %s187
          %s189 = sand.u32 %s43, 1
          %s190 = smul.addr %s189, 4
          %s191 = scalar_lea.vmem [#allocation3], %s190
          %s193 = ssub.s32 64, 64
          %194 = vsyncadd %s188, %s193
          %s195 = smul.addr %s26, 3
          %s196 = sadd.s32 %s27, %s195
          %s197 = smul.addr %s196, 64
          %s198 = scalar_lea.hbm %s0, %s197
          %s200 = sshll.u32 %s191, 4
          %s201 = int_to_ptr.vmem [resolvable:$true] %s200
          %203 = dma.hbm_to_vmem [thread:$0]  %s198, 64, %s201, %s188
        $region28: #{tpu_custom_call.1} parent=23 // pred_fallthru
          _
        // Predicated region
        $region29: #{tpu_custom_call.1} parent=23 // pred_check
          %p204 = pneg %p83
        $region30: #{tpu_custom_call.1} parent=23 // pred_check_branch
          %206 = sbr.rel (%p204) target = $region32
        $region31: #{tpu_custom_call.1} parent=23 // pred_region
          %s207 = sand.u32 %s73, 1
          %s208 = scalar_lea.sflag [#allocation7], %s207
          %s209 = sand.u32 %s73, 1
          %s210 = smul.addr %s209, 4
          %s211 = scalar_lea.vmem [#allocation6], %s210
          %s212 = sadd.s32 %s27, 1
          %s214 = ssub.s32 64, 64
          %215 = vsyncadd %s208, %s214
          %s216 = smul.addr %s26, 3
          %s217 = sadd.s32 %s212, %s216
          %s218 = smul.addr %s217, 64
          %s219 = scalar_lea.hbm %s1, %s218
          %s221 = sshll.u32 %s211, 4
          %s222 = int_to_ptr.vmem [resolvable:$true] %s221
          %224 = dma.hbm_to_vmem [thread:$0]  %s219, 64, %s222, %s208
        $region32: #{tpu_custom_call.1} parent=23 // pred_fallthru
          _
      $region24: #{tpu_custom_call.1} parent=5 // pred_fallthru
        _
      %p225 = scmp.le.s32.totalorder 1, %s19
      %p226 = scmp.lt.s32.totalorder %s19, 5
      %p227 = pnand %p225, %p226
      %p228 = pneg %p227
      // Predicated region
      $region33: #{tpu_custom_call.1} parent=5 // pred_check
        _
      $region34: #{tpu_custom_call.1} parent=5 // pred_check_branch
        %230 = sbr.rel (%p227) target = $region36
      $region35: #{tpu_custom_call.1} parent=5 // pred_region
        %s231 = ssub.s32 %s19, 1
        %s232 = sand.u32 %s46, 1
        %s233 = scalar_lea.sflag [#allocation4], %s232
        %s234 = sand.u32 %s46, 1
        %s235 = smul.addr %s234, 4
        %s236 = scalar_lea.vmem [#allocation3], %s235
        // Predicated region
        $region37: #{tpu_custom_call.1} parent=35 // pred_check
          %p237 = pneg %p59
        $region38: #{tpu_custom_call.1} parent=35 // pred_check_branch
          %239 = sbr.rel (%p237) target = $region40
        $region39: #{tpu_custom_call.1} parent=35 // pred_region
          %240 = dma.done %s233, 64
        $region40: #{tpu_custom_call.1} parent=35 // pred_fallthru
          _
        %s241 = sand.u32 %s76, 1
        %s242 = scalar_lea.sflag [#allocation7], %s241
        %s243 = sand.u32 %s76, 1
        %s244 = smul.addr %s243, 4
        %s245 = scalar_lea.vmem [#allocation6], %s244
        // Predicated region
        $region41: #{tpu_custom_call.1} parent=35 // pred_check
          %p246 = pneg %p89
        $region42: #{tpu_custom_call.1} parent=35 // pred_check_branch
          %248 = sbr.rel (%p246) target = $region44
        $region43: #{tpu_custom_call.1} parent=35 // pred_region
          %249 = dma.done %s242, 64
        $region44: #{tpu_custom_call.1} parent=35 // pred_fallthru
          _
        %s250 = sand.u32 %s46, 1
        %s251 = scalar_lea.sflag [#allocation4], %s250
        %s252 = sand.u32 %s46, 1
        %s253 = smul.addr %s252, 4
        %s254 = scalar_lea.vmem [#allocation3], %s253
        %p255 = pneg %p59
        %p256 = pneg %p56
        %s257 = sand.u32 %s76, 1
        %s258 = scalar_lea.sflag [#allocation7], %s257
        %s259 = sand.u32 %s76, 1
        %s260 = smul.addr %s259, 4
        %s261 = scalar_lea.vmem [#allocation6], %s260
        %p262 = pneg %p89
        %p263 = pneg %p86
        %p264 = pneg %p110
        %p265 = pneg %p107
        %p266 = pneg %p131
        %p267 = pneg %p128
        %p268 = pneg %p159
        %p269 = pneg %p156
        %s270 = sand.u32 %s146, 1
        %s271 = scalar_lea.sflag [#allocation5], %s270
        %s272 = sand.u32 %s146, 1
        %s273 = smul.addr %s272, 8
        %s274 = scalar_lea.vmem [#allocation8], %s273
        %s275 = sadd.s32 %s29, 1
        %v276 = vld [vmem:[%s236] sm:$0xf]
        %277 = vst [vmem:[#allocation2] sm:$0xf] %v276
        %v278 = vld [vmem:[%s236] sm:$0xf]
        %280 = vrot.lane.b32.xlu0 %v278, 127
        %v281 = vpop.permute.xlu0 %280
        %vm283 = vcmask 1035264
        %284 = vst.msk [vmem:[#allocation2 + $0x4] sm:$0xf] %vm283, %v281
        %v285 = vld [vmem:[%s245] sm:$0xf]
        %287 = vrot.lane.b32.xlu0 %v285, 127
        %v288 = vpop.permute.xlu0 %287
        %vm290 = vcmask 1044472
        %291 = vst.msk [vmem:[#allocation2 + $0x4] sm:$0xf] %vm290, %v288
        %v292 = vld [vmem:[%s236] sm:$0xf]
        %294 = vrot.lane.b32.xlu0 %v292, 126
        %v295 = vpop.permute.xlu0 %294
        %vm297 = vcmask 1027072
        %298 = vst.msk [vmem:[#allocation2 + $0x8] sm:$0xf] %vm297, %v295
        %v299 = vld [vmem:[%s245] sm:$0xf]
        %301 = vrot.lane.b32.xlu0 %v299, 126
        %v302 = vpop.permute.xlu0 %301
        %vm304 = vcmask 1044464
        %305 = vst.msk [vmem:[#allocation2 + $0x8] sm:$0xf] %vm304, %v302
        %v306 = vld [vmem:[%s236] sm:$0xf]
        %308 = vrot.lane.b32.xlu0 %v306, 112
        %v309 = vpop.permute.xlu0 %308
        %vm311 = vcmask 912384
        %312 = vst.msk [vmem:[#allocation2 + $0xc] sm:$0xf] %vm311, %v309
        %v313 = vld [vmem:[%s245] sm:$0xf]
        %315 = vrot.lane.b32.xlu0 %v313, 112
        %v316 = vpop.permute.xlu0 %315
        %vm318 = vcmask 1044352
        %319 = vst.msk [vmem:[#allocation2 + $0xc] sm:$0xf] %vm318, %v316
        %v320 = vld [vmem:[%s236] sm:$0xf]
        %322 = vrot.lane.b32.xlu0 %v320, 111
        %v323 = vpop.permute.xlu0 %322
        %vm325 = vcmask 904192
        %326 = vst.msk [vmem:[#allocation2 + $0x10] sm:$0xf] %vm325, %v323
        %v327 = vld [vmem:[%s245] sm:$0xf]
        %329 = vrot.lane.b32.xlu0 %v327, 111
        %v330 = vpop.permute.xlu0 %329
        %vm332 = vcmask 1044344
        %333 = vst.msk [vmem:[#allocation2 + $0x10] sm:$0xf] %vm332, %v330
        %v334 = vld [vmem:[%s236] sm:$0xf]
        %336 = vrot.lane.b32.xlu0 %v334, 110
        %v337 = vpop.permute.xlu0 %336
        %vm339 = vcmask 896000
        %340 = vst.msk [vmem:[#allocation2 + $0x14] sm:$0xf] %vm339, %v337
        %v341 = vld [vmem:[%s245] sm:$0xf]
        %343 = vrot.lane.b32.xlu0 %v341, 110
        %v344 = vpop.permute.xlu0 %343
        %vm346 = vcmask 1044336
        %347 = vst.msk [vmem:[#allocation2 + $0x14] sm:$0xf] %vm346, %v344
        %v348 = vld [vmem:[%s236] sm:$0xf]
        %350 = vrot.lane.b32.xlu0 %v348, 96
        %v351 = vpop.permute.xlu0 %350
        %vm353 = vcmask 781312
        %354 = vst.msk [vmem:[#allocation2 + $0x18] sm:$0xf] %vm353, %v351
        %v355 = vld [vmem:[%s245] sm:$0xf]
        %357 = vrot.lane.b32.xlu0 %v355, 96
        %v358 = vpop.permute.xlu0 %357
        %vm360 = vcmask 1044224
        %361 = vst.msk [vmem:[#allocation2 + $0x18] sm:$0xf] %vm360, %v358
        %v362 = vld [vmem:[%s236] sm:$0xf]
        %364 = vrot.lane.b32.xlu0 %v362, 95
        %v365 = vpop.permute.xlu0 %364
        %vm367 = vcmask 773120
        %368 = vst.msk [vmem:[#allocation2 + $0x1c] sm:$0xf] %vm367, %v365
        %v369 = vld [vmem:[%s245] sm:$0xf]
        %371 = vrot.lane.b32.xlu0 %v369, 95
        %v372 = vpop.permute.xlu0 %371
        %vm374 = vcmask 1044216
        %375 = vst.msk [vmem:[#allocation2 + $0x1c] sm:$0xf] %vm374, %v372
        %v376 = vld [vmem:[%s236] sm:$0xf]
        %378 = vrot.lane.b32.xlu0 %v376, 94
        %v379 = vpop.permute.xlu0 %378
        %vm381 = vcmask 764928
        %382 = vst.msk [vmem:[#allocation2 + $0x20] sm:$0xf] %vm381, %v379
        %v383 = vld [vmem:[%s245] sm:$0xf]
        %385 = vrot.lane.b32.xlu0 %v383, 94
        %v386 = vpop.permute.xlu0 %385
        %vm388 = vcmask 1044208
        %389 = vst.msk [vmem:[#allocation2 + $0x20] sm:$0xf] %vm388, %v386
        %v390 = vld [vmem:[%s2] sm:$0xff]
        %v391 = vld [vmem:[#allocation2] sm:$0xff]
        %v392 = vld [vmem:[#allocation2 + $0x8] sm:$0xff]
        %v393 = vld [vmem:[#allocation2 + $0x10] sm:$0xff]
        %v394 = vld [vmem:[#allocation2 + $0x18] sm:$0xff]
        %v395 = vld [vmem:[#allocation2 + $0x20] sm:$0xf]
        %v396 = vld [vmem:[%s3] sm:$0xff]
        %398 = vset.pattern.permute.xlu0 0
        %399 = vperm.xlu0 %398, %v396
        %v400 = vpop.permute.xlu0 %399
        %vm402 = vcmask 293888
        %v404 = vsel %vm402, %v390, 0
        %vm406 = vcmask 1043456
        %v408 = vsel %vm406, %v395, 0
        %410 = vmatprep.subr.mxu0 0.0
        %411 = vmatpush1.msra.mxu0 0.0
        %412 = vmatprep.subr.mxu0 0.0
        %413 = vmatpush1.msra.mxu0 0.0
        %414 = vmatprep.subr.mxu0 0.0
        %415 = vmatpush1.msra.mxu0 0.0
        %416 = vmatprep.subr.mxu0 0.0
        %417 = vmatpush1.msra.mxu0 0.0
        %418 = vmatprep.subr.mxu0 0.0
        %419 = vmatpush1.msra.mxu0 0.0
        %420 = vmatprep.subr.mxu0 0.0
        %421 = vmatpush1.msra.mxu0 0.0
        %422 = vmatprep.subr.mxu0 0.0
        %423 = vmatpush1.msra.mxu0 0.0
        %424 = vmatprep.subr.mxu0 0.0
        %425 = vmatpush1.msra.mxu0 0.0
        %426 = vmatprep.subr.mxu0 0.0
        %427 = vmatpush1.msra.mxu0 0.0
        %428 = vmatprep.subr.mxu0 0.0
        %429 = vmatpush1.msra.mxu0 0.0
        %430 = vmatprep.subr.mxu0 0.0
        %431 = vmatpush1.msra.mxu0 0.0
        %432 = vmatprep.subr.mxu0 0.0
        %433 = vmatpush1.msra.mxu0 %v408
        %434 = vmatprep.subr.mxu0 0.0
        %435 = vmatpush1.msra.mxu0 %v394
        %436 = vmatprep.subr.mxu0 0.0
        %437 = vmatpush1.msra.mxu0 %v393
        %438 = vmatprep.subr.mxu0 0.0
        %439 = vmatpush1.msra.mxu0 %v392
        %440 = vmatprep.subr.mxu0 0.0
        %441 = vmatpush1.msra.mxu0 %v391
        %442 = vmatprep.subr.mxu0 0.0
        %443 = vmatpush2.msra.mxu0 0.0
        %444 = vmatprep.subr.mxu0 0.0
        %445 = vmatpush2.msra.mxu0 0.0
        %446 = vmatprep.subr.mxu0 0.0
        %447 = vmatpush2.msra.mxu0 0.0
        %448 = vmatprep.subr.mxu0 0.0
        %449 = vmatpush2.msra.mxu0 0.0
        %450 = vmatprep.subr.mxu0 0.0
        %451 = vmatpush2.msra.mxu0 0.0
        %452 = vmatprep.subr.mxu0 0.0
        %453 = vmatpush2.msra.mxu0 0.0
        %454 = vmatprep.subr.mxu0 0.0
        %455 = vmatpush2.msra.mxu0 0.0
        %456 = vmatprep.subr.mxu0 0.0
        %457 = vmatpush2.msra.mxu0 0.0
        %458 = vmatprep.subr.mxu0 0.0
        %459 = vmatpush2.msra.mxu0 0.0
        %460 = vmatprep.subr.mxu0 0.0
        %461 = vmatpush2.msra.mxu0 0.0
        %462 = vmatprep.subr.mxu0 0.0
        %463 = vmatpush2.msra.mxu0 0.0
        %464 = vmatprep.subr.mxu0 0.0
        %465 = vmatpush2.msra.mxu0 0.0
        %466 = vmatprep.subr.mxu0 0.0
        %467 = vmatpush2.msra.mxu0 0.0
        %468 = vmatprep.subr.mxu0 0.0
        %469 = vmatpush2.msra.mxu0 0.0
        %470 = vmatprep.subr.mxu0 0.0
        %471 = vmatpush2.msra.mxu0 0.0
        %472 = vmatprep.subr.mxu0 0.0
        %473 = vmatpush2.msra.mxu0 0.0
        %474 = vmatprep.mubr.f32.mxu0 0.0
        %475 = vmatmul.mubr.f32.gmra.mxu0 %v404
        %v476 = vpop.f32.mrf.mxu0
        %v477 = vadd.f32 %v400, %v476
        %v478 = vpop.f32.mrf.mxu0
        %479 = vdwg.mxu0
        %480 = vst [vmem:[%s274] sm:$0xff] %v477
        %s481 = sand.u32 %s146, 1
        %s482 = scalar_lea.sflag [#allocation5], %s481
        %s483 = sand.u32 %s146, 1
        %s484 = smul.addr %s483, 8
        %s485 = scalar_lea.vmem [#allocation8], %s484
        // Predicated region
        $region45: #{tpu_custom_call.1} parent=35 // pred_check
          %p486 = pneg %p156
        $region46: #{tpu_custom_call.1} parent=35 // pred_check_branch
          %488 = sbr.rel (%p486) target = $region48
        $region47: #{tpu_custom_call.1} parent=35 // pred_region
          %s490 = ssub.s32 128, 128
          %491 = vsyncadd %s482, %s490
          %s492 = smul.addr %s28, 2
          %s493 = sadd.s32 %s29, %s492
          %s494 = smul.addr %s493, 128
          %s495 = scalar_lea.hbm %s4, %s494
          %s497 = sshll.u32 %s485, 4
          %s498 = int_to_ptr.vmem [resolvable:$true] %s497
          %500 = dma.vmem_to_hbm [thread:$0]  %s498, 128, %s495, %s482
        $region48: #{tpu_custom_call.1} parent=35 // pred_fallthru
          _
      $region36: #{tpu_custom_call.1} parent=5 // pred_fallthru
        _
      %p501 = scmp.le.s32.totalorder 2, %s19
      // Predicated region
      $region49: #{tpu_custom_call.1} parent=5 // pred_check
        %p502 = pneg %p501
      $region50: #{tpu_custom_call.1} parent=5 // pred_check_branch
        %504 = sbr.rel (%p502) target = $region52
      $region51: #{tpu_custom_call.1} parent=5 // pred_region
        %s505 = ssub.s32 %s19, 2
        // Predicated region
        $region53: #{tpu_custom_call.1} parent=51 // pred_check
          %p506 = pneg %p162
        $region54: #{tpu_custom_call.1} parent=51 // pred_check_branch
          %508 = sbr.rel (%p506) target = $region56
        $region55: #{tpu_custom_call.1} parent=51 // pred_region
          %s509 = sand.u32 %s147, 1
          %s510 = scalar_lea.sflag [#allocation5], %s509
          %s511 = sand.u32 %s147, 1
          %s512 = smul.addr %s511, 8
          %s513 = scalar_lea.vmem [#allocation8], %s512
          %514 = dma.done %s510, 128
        $region56: #{tpu_custom_call.1} parent=51 // pred_fallthru
          _
      $region52: #{tpu_custom_call.1} parent=5 // pred_fallthru
        _
    $region6: #{tpu_custom_call.1} parent=1 // loop_footer
      %s23 = sadd.s32 1, %s19
    $region7: #{tpu_custom_call.1} parent=1 // loop_footer_branch
      %18 = sbr.rel target = $region3
    $region8: #{tpu_custom_call.1} parent=1 // loop_exit
      _
    %515 = vsyncpa [#allocation4], 1
    %s516 = scalar_lea.sflag [#allocation4], 1
    %517 = vsyncpa %s516, 1
    %518 = vsyncpa [#allocation7], 1
    %s519 = scalar_lea.sflag [#allocation7], 1
    %520 = vsyncpa %s519, 1
    %521 = vsyncpa [#allocation5], 1
    %s522 = scalar_lea.sflag [#allocation5], 1
    %523 = vsyncpa %s522, 1

</llo_original>
